<compile_context>
chip_gen: v7x
topology: tpu7x:2x2x1
jax: 0.10.0
libtpu: 0.0.40
codegen_flags: <defaults>
</compile_context>

<pallas_src>
import math

import jax
import jax.numpy as jnp
from jax import lax
from jax.experimental import pallas as pl
from jax.experimental.pallas import tpu as pltpu

HEAD_DIM = 64


def mha_kernel(x_ref, wqkv_ref, bqkv_ref, wo_ref, bo_ref, o_ref):
    # x_ref   : (1, S, D)  f32   current batch element
    # wqkv_ref: (D, 3D)    bf16  fused [Wq.T * scale | Wk.T | Wv.T]
    # bqkv_ref: (1, 3D)    f32   fused [bq * scale | bk | bv]
    # wo_ref  : (D, D)     bf16  out_proj.weight.T
    # bo_ref  : (1, D)     f32
    # o_ref   : (1, S, D)
    D = wo_ref.shape[0]
    H = D // HEAD_DIM

    x = x_ref[0].astype(jnp.bfloat16)                              # (S, D)

    # Fused QKV projection: one full-width GEMM (N = 3D), f32 accumulation,
    # single lane-dense bias add (scale already folded into the Q columns).
    qkv = jnp.dot(x, wqkv_ref[...], preferred_element_type=jnp.float32)
    qkv = qkv + bqkv_ref[...]                                      # (S, 3D) f32

    att_heads = []
    # Static loop over heads (H is small here; for large H / long S this would
    # become a fori_loop + flash-style kv tiling — see TODO below).
    for h in range(H):
        lo = h * HEAD_DIM
        q = qkv[:, lo:lo + HEAD_DIM].astype(jnp.bfloat16)           # (S, 64)
        k = qkv[:, D + lo:D + lo + HEAD_DIM].astype(jnp.bfloat16)
        v = qkv[:, 2 * D + lo:2 * D + lo + HEAD_DIM].astype(jnp.bfloat16)

        # scores (S, S) = (q * scale) @ k^T  (scale folded into wqkv/bqkv glue)
        s = lax.dot_general(q, k, (((1,), (1,)), ((), ())),
                            preferred_element_type=jnp.float32)

        # numerically-stable softmax along keys; f32 VPU math, divide on EUP
        m = jnp.max(s, axis=-1, keepdims=True)
        p = jnp.exp(s - m)
        l = jnp.sum(p, axis=-1, keepdims=True)
        p = p * pl.reciprocal(l, approx=True)

        att = jnp.dot(p.astype(jnp.bfloat16), v,
                      preferred_element_type=jnp.float32)           # (S, 64)
        att_heads.append(att.astype(jnp.bfloat16))

    att_all = jnp.concatenate(att_heads, axis=-1)                   # (S, D) bf16

    # Single output projection: K = D fills the MXU; one bias add.
    out = jnp.dot(att_all, wo_ref[...], preferred_element_type=jnp.float32)
    out = out + bo_ref[...]
    o_ref[0] = out.astype(o_ref.dtype)


def mha_pallas(x, wq, bq, wk, bk, wv, bv, wo, bo):
    """x: (B, S, D).  w*: torch nn.Linear weights (out, in) = (D, D); b*: (D,)."""
    B, S, D = x.shape
    assert D % HEAD_DIM == 0
    scale = 1.0 / math.sqrt(HEAD_DIM)

    # Glue (plain JAX, parameter-side only): fused QKV weight/bias in MXU
    # layout, 1/sqrt(head_dim) folded into the Q columns, bf16 matmul operands.
    w_qkv = jnp.concatenate([wq.T * scale, wk.T, wv.T], axis=1).astype(jnp.bfloat16)
    b_qkv = jnp.concatenate([bq * scale, bk, bv]).reshape(1, 3 * D).astype(jnp.float32)
    wo_t = wo.T.astype(jnp.bfloat16)
    bo_2d = bo.reshape(1, D).astype(jnp.float32)

    # TODO(synk): for long sequences (S >= ~1024) the (S, S) score matrix and
    # the monolithic (1, S, D) block should be replaced by flash-style query/kv
    # tiling with online softmax (grid (B, S//tq) + "arbitrary" kv axis); the
    # grid-invariant weights could then also be single-buffered.
    return pl.pallas_call(
        mha_kernel,
        out_shape=jax.ShapeDtypeStruct((B, S, D), x.dtype),
        grid_spec=pltpu.PrefetchScalarGridSpec(
            num_scalar_prefetch=0,
            grid=(B,),
            in_specs=[
                pl.BlockSpec((1, S, D), lambda b: (b, 0, 0)),
                pl.BlockSpec((D, 3 * D), lambda b: (0, 0)),
                pl.BlockSpec((1, 3 * D), lambda b: (0, 0)),
                pl.BlockSpec((D, D), lambda b: (0, 0)),
                pl.BlockSpec((1, D), lambda b: (0, 0)),
            ],
            out_specs=pl.BlockSpec((1, S, D), lambda b: (b, 0, 0)),
        ),
        compiler_params=pltpu.CompilerParams(
            dimension_semantics=("parallel",),
            vmem_limit_bytes=64 * 1024 * 1024,
        ),
    )(x, w_qkv, b_qkv, wo_t, bo_2d)


def mha_reference(x, wq, bq, wk, bk, wv, bv, wo, bo):
    """Pure-JAX (f32) mirror of the PyTorch MHA.forward (eval mode, dropout=0)."""
    B, S, D = x.shape
    H = D // HEAD_DIM
    q = (x @ wq.T + bq).reshape(B, S, H, HEAD_DIM).transpose(0, 2, 1, 3)
    k = (x @ wk.T + bk).reshape(B, S, H, HEAD_DIM).transpose(0, 2, 1, 3)
    v = (x @ wv.T + bv).reshape(B, S, H, HEAD_DIM).transpose(0, 2, 1, 3)
    s = jnp.einsum("bhqd,bhkd->bhqk", q, k) / math.sqrt(HEAD_DIM)
    p = jax.nn.softmax(s, axis=-1)
    o = jnp.einsum("bhqk,bhkd->bhqd", p, v)
    o = o.transpose(0, 2, 1, 3).reshape(B, S, D)
    return o @ wo.T + bo


if __name__ == "__main__":
    B, S, D = 2, 16, 128          # d_model=128 -> 2 heads of head_dim=64
    key = jax.random.PRNGKey(0)
    keys = jax.random.split(key, 9)

    x = jax.random.normal(keys[0], (B, S, D), jnp.float32)
    # Deterministic parameter init (torch nn.Linear shapes: W=(out,in), b=(out,))
    wq = 0.02 * jax.random.normal(keys[1], (D, D), jnp.float32)
    wk = 0.02 * jax.random.normal(keys[2], (D, D), jnp.float32)
    wv = 0.02 * jax.random.normal(keys[3], (D, D), jnp.float32)
    wo = 0.02 * jax.random.normal(keys[4], (D, D), jnp.float32)
    bq = 0.01 * jax.random.normal(keys[5], (D,), jnp.float32)
    bk = 0.01 * jax.random.normal(keys[6], (D,), jnp.float32)
    bv = 0.01 * jax.random.normal(keys[7], (D,), jnp.float32)
    bo = 0.01 * jax.random.normal(keys[8], (D,), jnp.float32)

    out = mha_pallas(x, wq, bq, wk, bk, wv, bv, wo, bo)
    out = jax.block_until_ready(out)

    ref = mha_reference(x, wq, bq, wk, bk, wv, bv, wo, bo)
    assert out.shape == (B, S, D)
    # bf16 MXU operands + approx reciprocal -> loosened tolerance vs f32 ref.
    assert jnp.allclose(out, ref, rtol=2e-2, atol=2e-2), "mismatch vs reference"

    # TODO(synk): training-time dropout on attention weights is not implemented
    # (module exercised in eval mode, dropout_p=0.0), matching forward() semantics.
    print("KERNEL_OK")
</pallas_src>

<mosaic_0001>
module attributes {stable_mosaic.version = 11 : i64} {
  func.func @mha_kernel(%arg0: i32, %arg1: memref<1x16x128xf32, #tpu.memory_space<vmem>>, %arg2: memref<128x384xbf16, #tpu.memory_space<vmem>>, %arg3: memref<1x384xf32, #tpu.memory_space<vmem>>, %arg4: memref<128x128xbf16, #tpu.memory_space<vmem>>, %arg5: memref<1x128xf32, #tpu.memory_space<vmem>>, %arg6: memref<1x16x128xf32, #tpu.memory_space<vmem>>) attributes {dimension_semantics = [#tpu.dimension_semantics<parallel>], iteration_bounds = array<i64: 2>, scalar_prefetch = 0 : i64, scratch_operands = 0 : i64, tpu.core_type = #tpu.core_type<tc>, window_params = [{transform_indices = @transform_0, window_bounds = array<i64: 1, 16, 128>}, {pipeline_mode = #tpu.pipeline_mode<synchronous>, transform_indices = @transform_1, window_bounds = array<i64: 128, 384>}, {pipeline_mode = #tpu.pipeline_mode<synchronous>, transform_indices = @transform_2, window_bounds = array<i64: 1, 384>}, {pipeline_mode = #tpu.pipeline_mode<synchronous>, transform_indices = @transform_3, window_bounds = array<i64: 128, 128>}, {pipeline_mode = #tpu.pipeline_mode<synchronous>, transform_indices = @transform_4, window_bounds = array<i64: 1, 128>}, {transform_indices = @transform_5, window_bounds = array<i64: 1, 16, 128>}]} {
    %c0 = arith.constant 0 : index
    %c0_0 = arith.constant 0 : index
    %c0_1 = arith.constant 0 : index
    %0 = vector.load %arg1[%c0, %c0_0, %c0_1] : memref<1x16x128xf32, #tpu.memory_space<vmem>>, vector<1x16x128xf32>
    %1 = vector.shape_cast %0 : vector<1x16x128xf32> to vector<16x128xf32>
    %2 = arith.truncf %1 : vector<16x128xf32> to vector<16x128xbf16>
    %c0_2 = arith.constant 0 : index
    %c0_3 = arith.constant 0 : index
    %3 = vector.load %arg2[%c0_2, %c0_3] : memref<128x384xbf16, #tpu.memory_space<vmem>>, vector<128x384xbf16>
    %cst = arith.constant dense<0.000000e+00> : vector<16x384xf32>
    %4 = tpu.matmul %2, %3, %cst {dimension_numbers = #tpu.dot_dimension_numbers<[1], [0], [0], [1], [0, 0, 1, 1], [], []>} : vector<16x128xbf16>, vector<128x384xbf16>, vector<16x384xf32> -> vector<16x384xf32>
    %c0_4 = arith.constant 0 : index
    %c0_5 = arith.constant 0 : index
    %5 = vector.load %arg3[%c0_4, %c0_5] : memref<1x384xf32, #tpu.memory_space<vmem>>, vector<1x384xf32>
    %6 = vector.broadcast %5 : vector<1x384xf32> to vector<16x384xf32>
    %7 = arith.addf %4, %6 : vector<16x384xf32>
    %8 = vector.extract_strided_slice %7 {offsets = [0, 0], sizes = [16, 64], strides = [1, 1]} : vector<16x384xf32> to vector<16x64xf32>
    %9 = arith.truncf %8 : vector<16x64xf32> to vector<16x64xbf16>
    %10 = vector.extract_strided_slice %7 {offsets = [0, 128], sizes = [16, 64], strides = [1, 1]} : vector<16x384xf32> to vector<16x64xf32>
    %11 = arith.truncf %10 : vector<16x64xf32> to vector<16x64xbf16>
    %12 = vector.extract_strided_slice %7 {offsets = [0, 256], sizes = [16, 64], strides = [1, 1]} : vector<16x384xf32> to vector<16x64xf32>
    %13 = arith.truncf %12 : vector<16x64xf32> to vector<16x64xbf16>
    %cst_6 = arith.constant dense<0.000000e+00> : vector<16x16xf32>
    %14 = tpu.matmul %9, %11, %cst_6 {dimension_numbers = #tpu.dot_dimension_numbers<[1], [1], [0], [0], [0, 0, 1, 0], [], []>} : vector<16x64xbf16>, vector<16x64xbf16>, vector<16x16xf32> -> vector<16x16xf32>
    %cst_7 = arith.constant dense<0xFF800000> : vector<16xf32>
    %15 = vector.multi_reduction <maximumf>, %14, %cst_7 [1] : vector<16x16xf32> to vector<16xf32>
    %16 = vector.shape_cast %15 : vector<16xf32> to vector<16x1xf32>
    %17 = vector.broadcast %16 : vector<16x1xf32> to vector<16x16xf32>
    %18 = arith.subf %14, %17 : vector<16x16xf32>
    %19 = math.exp %18 : vector<16x16xf32>
    %cst_8 = arith.constant dense<0.000000e+00> : vector<16xf32>
    %20 = vector.multi_reduction <add>, %19, %cst_8 [1] : vector<16x16xf32> to vector<16xf32>
    %21 = vector.shape_cast %20 : vector<16xf32> to vector<16x1xf32>
    %22 = tpu.reciprocal %21 {approx = true} : vector<16x1xf32> -> vector<16x1xf32>
    %23 = vector.broadcast %22 : vector<16x1xf32> to vector<16x16xf32>
    %24 = arith.mulf %19, %23 : vector<16x16xf32>
    %25 = arith.truncf %24 : vector<16x16xf32> to vector<16x16xbf16>
    %cst_9 = arith.constant dense<0.000000e+00> : vector<16x64xf32>
    %26 = tpu.matmul %25, %13, %cst_9 {dimension_numbers = #tpu.dot_dimension_numbers<[1], [0], [0], [1], [0, 0, 1, 1], [], []>} : vector<16x16xbf16>, vector<16x64xbf16>, vector<16x64xf32> -> vector<16x64xf32>
    %27 = arith.truncf %26 : vector<16x64xf32> to vector<16x64xbf16>
    %28 = vector.extract_strided_slice %7 {offsets = [0, 64], sizes = [16, 64], strides = [1, 1]} : vector<16x384xf32> to vector<16x64xf32>
    %29 = arith.truncf %28 : vector<16x64xf32> to vector<16x64xbf16>
    %30 = vector.extract_strided_slice %7 {offsets = [0, 192], sizes = [16, 64], strides = [1, 1]} : vector<16x384xf32> to vector<16x64xf32>
    %31 = arith.truncf %30 : vector<16x64xf32> to vector<16x64xbf16>
    %32 = vector.extract_strided_slice %7 {offsets = [0, 320], sizes = [16, 64], strides = [1, 1]} : vector<16x384xf32> to vector<16x64xf32>
    %33 = arith.truncf %32 : vector<16x64xf32> to vector<16x64xbf16>
    %cst_10 = arith.constant dense<0.000000e+00> : vector<16x16xf32>
    %34 = tpu.matmul %29, %31, %cst_10 {dimension_numbers = #tpu.dot_dimension_numbers<[1], [1], [0], [0], [0, 0, 1, 0], [], []>} : vector<16x64xbf16>, vector<16x64xbf16>, vector<16x16xf32> -> vector<16x16xf32>
    %cst_11 = arith.constant dense<0xFF800000> : vector<16xf32>
    %35 = vector.multi_reduction <maximumf>, %34, %cst_11 [1] : vector<16x16xf32> to vector<16xf32>
    %36 = vector.shape_cast %35 : vector<16xf32> to vector<16x1xf32>
    %37 = vector.broadcast %36 : vector<16x1xf32> to vector<16x16xf32>
    %38 = arith.subf %34, %37 : vector<16x16xf32>
    %39 = math.exp %38 : vector<16x16xf32>
    %cst_12 = arith.constant dense<0.000000e+00> : vector<16xf32>
    %40 = vector.multi_reduction <add>, %39, %cst_12 [1] : vector<16x16xf32> to vector<16xf32>
    %41 = vector.shape_cast %40 : vector<16xf32> to vector<16x1xf32>
    %42 = tpu.reciprocal %41 {approx = true} : vector<16x1xf32> -> vector<16x1xf32>
    %43 = vector.broadcast %42 : vector<16x1xf32> to vector<16x16xf32>
    %44 = arith.mulf %39, %43 : vector<16x16xf32>
    %45 = arith.truncf %44 : vector<16x16xf32> to vector<16x16xbf16>
    %cst_13 = arith.constant dense<0.000000e+00> : vector<16x64xf32>
    %46 = tpu.matmul %45, %33, %cst_13 {dimension_numbers = #tpu.dot_dimension_numbers<[1], [0], [0], [1], [0, 0, 1, 1], [], []>} : vector<16x16xbf16>, vector<16x64xbf16>, vector<16x64xf32> -> vector<16x64xf32>
    %47 = arith.truncf %46 : vector<16x64xf32> to vector<16x64xbf16>
    %48 = tpu.concatenate %27, %47 in 1 : vector<16x64xbf16>, vector<16x64xbf16> -> vector<16x128xbf16>
    %c0_14 = arith.constant 0 : index
    %c0_15 = arith.constant 0 : index
    %49 = vector.load %arg4[%c0_14, %c0_15] : memref<128x128xbf16, #tpu.memory_space<vmem>>, vector<128x128xbf16>
    %cst_16 = arith.constant dense<0.000000e+00> : vector<16x128xf32>
    %50 = tpu.matmul %48, %49, %cst_16 {dimension_numbers = #tpu.dot_dimension_numbers<[1], [0], [0], [1], [0, 0, 1, 1], [], []>} : vector<16x128xbf16>, vector<128x128xbf16>, vector<16x128xf32> -> vector<16x128xf32>
    %c0_17 = arith.constant 0 : index
    %c0_18 = arith.constant 0 : index
    %51 = vector.load %arg5[%c0_17, %c0_18] : memref<1x128xf32, #tpu.memory_space<vmem>>, vector<1x128xf32>
    %52 = vector.broadcast %51 : vector<1x128xf32> to vector<16x128xf32>
    %53 = arith.addf %50, %52 : vector<16x128xf32>
    %c0_19 = arith.constant 0 : index
    %c0_20 = arith.constant 0 : index
    %c0_21 = arith.constant 0 : index
    %54 = vector.load %arg6[%c0_19, %c0_20, %c0_21] : memref<1x16x128xf32, #tpu.memory_space<vmem>>, vector<1x16x128xf32>
    %55 = vector.shape_cast %54 : vector<1x16x128xf32> to vector<16x128xf32>
    %56 = vector.shape_cast %53 : vector<16x128xf32> to vector<1x16x128xf32>
    tpu.vector_store %arg6[%c0_19, %c0_20, %c0_21], %56 {strides = array<i32>} : memref<1x16x128xf32, #tpu.memory_space<vmem>>, vector<1x16x128xf32>,
    return
  }
  func.func @transform_0(%arg0: i32) -> (i32, i32, i32) {
    %c0_i32 = arith.constant 0 : i32
    %c0_i32_0 = arith.constant 0 : i32
    %c0_i32_1 = arith.constant 0 : i32
    return %arg0, %c0_i32, %c0_i32_0 : i32, i32, i32
  }
  func.func @transform_1(%arg0: i32) -> (i32, i32) {
    %c0_i32 = arith.constant 0 : i32
    %c0_i32_0 = arith.constant 0 : i32
    %c0_i32_1 = arith.constant 0 : i32
    return %c0_i32, %c0_i32_0 : i32, i32
  }
  func.func @transform_2(%arg0: i32) -> (i32, i32) {
    %c0_i32 = arith.constant 0 : i32
    %c0_i32_0 = arith.constant 0 : i32
    %c0_i32_1 = arith.constant 0 : i32
    return %c0_i32, %c0_i32_0 : i32, i32
  }
  func.func @transform_3(%arg0: i32) -> (i32, i32) {
    %c0_i32 = arith.constant 0 : i32
    %c0_i32_0 = arith.constant 0 : i32
    %c0_i32_1 = arith.constant 0 : i32
    return %c0_i32, %c0_i32_0 : i32, i32
  }
  func.func @transform_4(%arg0: i32) -> (i32, i32) {
    %c0_i32 = arith.constant 0 : i32
    %c0_i32_0 = arith.constant 0 : i32
    %c0_i32_1 = arith.constant 0 : i32
    return %c0_i32, %c0_i32_0 : i32, i32
  }
  func.func @transform_5(%arg0: i32) -> (i32, i32, i32) {
    %c0_i32 = arith.constant 0 : i32
    %c0_i32_0 = arith.constant 0 : i32
    %c0_i32_1 = arith.constant 0 : i32
    return %arg0, %c0_i32, %c0_i32_0 : i32, i32, i32
  }
}

</mosaic_0001>

<llo_original>
// kernel: tpu_custom_call.1
$region0: #{tpu_custom_call.1}
  #allocation0 [shape = 'u32[]', space=smem, size = 0x4, offset = 0x4, fixed_abs, tag = 'smem constant byte address 0x4 - core index']
  #allocation1 [shape = 'u32[144,128]{1,0:T(1,128)}', space=vmem, size = 0x12000, scoped, tag = 'internal scratch']
  %s0 = inlined_call_operand.hbm [shape: f32[2,16,128], index: 0, kind: input, shape index: {}]
  %s1 = inlined_call_operand.hbm [shape: bf16[128,384], index: 1, kind: input, shape index: {}]
  %s2 = inlined_call_operand.hbm [shape: f32[1,384], index: 2, kind: input, shape index: {}]
  %s3 = inlined_call_operand.hbm [shape: bf16[128,128], index: 3, kind: input, shape index: {}]
  %s4 = inlined_call_operand.hbm [shape: f32[1,128], index: 4, kind: input, shape index: {}]
  %s5 = inlined_call_operand.hbm [shape: f32[2,16,128], index: 5, kind: output, shape index: {}]
  %s6 = sld [smem:[#allocation0]]
  $region73: #{tpu_custom_call.1} parent=0
    _
  %s8 = ssub.s32 1, %s6
  %s9 = scalar_select 0, %s8, %s6
  $region1: #{tpu_custom_call.1} parent=0
    #allocation2 [shape = 'u8[16384]{0}', space=vmem, size = 0x4000, scoped, tag = 'input window, operand 0']
    #allocation3 [shape = 's32[2]{0}', space=sflag, size = 0x8, scoped, tag = 'scoped memory for tpu_custom_call.1']
    #allocation4 [shape = 's32[2]{0}', space=sflag, size = 0x8, scoped, tag = 'scoped memory for tpu_custom_call.1']
    #allocation5 [shape = 'u8[98304]{0}', space=vmem, size = 0x18000, scoped, tag = 'input window, operand 1, single buffered']
    #allocation6 [shape = 's32[1]{0}', space=sflag, size = 0x4, scoped, tag = 'scoped memory for tpu_custom_call.1']
    #allocation7 [shape = 'u8[1536]{0}', space=vmem, size = 0x800, scoped, tag = 'input window, operand 2, single buffered']
    #allocation8 [shape = 'u8[32768]{0}', space=vmem, size = 0x8000, scoped, tag = 'input window, operand 3, single buffered']
    #allocation9 [shape = 's32[1]{0}', space=sflag, size = 0x4, scoped, tag = 'scoped memory for tpu_custom_call.1']
    #allocation10 [shape = 'u8[512]{0}', space=vmem, size = 0x400, scoped, tag = 'input window, operand 4, single buffered']
    #allocation11 [shape = 'u8[16384]{0}', space=vmem, size = 0x4000, scoped, tag = 'output window, operand 0']
    %10 = vsyncpa [#allocation3], 0
    %s11 = scalar_lea.sflag [#allocation3], 1
    %12 = vsyncpa %s11, 0
    %13 = vsyncpa [#allocation6], 0
    %14 = vsyncpa [#allocation9], 0
    %15 = vsyncpa [#allocation4], 0
    %s16 = scalar_lea.sflag [#allocation4], 1
    %17 = vsyncpa %s16, 0
    loop: start=0, step=1, limit=4
    $region2: #{tpu_custom_call.1} parent=1 // loop_pre_header
      _
    $region3: #{tpu_custom_call.1} parent=1 // loop_header
      %s19 = sphi 0, %s23
      %p20 = scmp.ge.s32.totalorder %s19, 4
      %s29 = sphi 0, %s31
      %s32 = sphi 0, %s29
      %s33 = sphi 0, %s32
      %s49 = sphi 0, %s33
      %s53 = sphi 0, %s53
      %s55 = sphi 0, %s53
      %s56 = sphi 0, %s55
      %s70 = sphi 0, %s56
      %s74 = sphi 0, %s74
      %s76 = sphi 0, %s74
      %s77 = sphi 0, %s76
      %s91 = sphi 0, %s77
      %s95 = sphi 0, %s95
      %s97 = sphi 0, %s95
      %s98 = sphi 0, %s97
      %s112 = sphi 0, %s98
      %s116 = sphi 0, %s116
      %s118 = sphi 0, %s116
      %s119 = sphi 0, %s118
      %s133 = sphi 0, %s119
      %s139 = sphi 0, %s141
      %s142 = sphi 0, %s139
      %s143 = sphi 0, %s142
      %s159 = sphi 0, %s143
    $region4: #{tpu_custom_call.1} parent=1 // loop_header_branch
      %22 = sbr.rel (%p20) target = $region8
    $region5: #{tpu_custom_call.1} parent=1 // loop_body
      %s24 = ssub.s32 %s19, 1
      %s25 = ssub.s32 %s19, 2
      %s26 = sadd.s32 %s19, 1
      %s27 = ssub.s32 %s19, %s26
      %p28 = scmp.eq.s32.totalorder %s27, 0
      %s30 = sadd.s32 %s29, 1
      %s31 = scalar_select %p28, %s29, %s30
      %p34 = pneg %p28
      %p35 = scmp.eq.s32.totalorder %s19, 1
      %p36 = por %p34, %p35
      %p37 = scmp.ne.s32.totalorder %s29, %s32
      %p38 = scmp.eq.s32.totalorder %s19, 0
      %p39 = por %p37, %p38
      %p40 = scmp.ne.s32.totalorder %s29, %s32
      %p41 = scmp.eq.s32.totalorder %s24, 1
      %p42 = por %p40, %p41
      %p43 = scmp.ne.s32.totalorder %s32, %s33
      %p44 = scmp.eq.s32.totalorder %s24, 0
      %p45 = por %p43, %p44
      %p46 = scmp.ne.s32.totalorder %s32, %s33
      %p47 = scmp.eq.s32.totalorder %s25, 1
      %p48 = por %p46, %p47
      %p50 = scmp.ne.s32.totalorder %s33, %s49
      %p51 = scmp.eq.s32.totalorder %s25, 0
      %p52 = por %p50, %p51
      %s54 = sadd.s32 %s53, 1
      %p57 = scmp.eq.s32.totalorder %s19, 1
      %p58 = scmp.ne.s32.totalorder %s53, %s55
      %p59 = scmp.eq.s32.totalorder %s19, 0
      %p60 = por %p58, %p59
      %p61 = scmp.ne.s32.totalorder %s53, %s55
      %p62 = scmp.eq.s32.totalorder %s24, 1
      %p63 = por %p61, %p62
      %p64 = scmp.ne.s32.totalorder %s55, %s56
      %p65 = scmp.eq.s32.totalorder %s24, 0
      %p66 = por %p64, %p65
      %p67 = scmp.ne.s32.totalorder %s55, %s56
      %p68 = scmp.eq.s32.totalorder %s25, 1
      %p69 = por %p67, %p68
      %p71 = scmp.ne.s32.totalorder %s56, %s70
      %p72 = scmp.eq.s32.totalorder %s25, 0
      %p73 = por %p71, %p72
      %s75 = sadd.s32 %s74, 1
      %p78 = scmp.eq.s32.totalorder %s19, 1
      %p79 = scmp.ne.s32.totalorder %s74, %s76
      %p80 = scmp.eq.s32.totalorder %s19, 0
      %p81 = por %p79, %p80
      %p82 = scmp.ne.s32.totalorder %s74, %s76
      %p83 = scmp.eq.s32.totalorder %s24, 1
      %p84 = por %p82, %p83
      %p85 = scmp.ne.s32.totalorder %s76, %s77
      %p86 = scmp.eq.s32.totalorder %s24, 0
      %p87 = por %p85, %p86
      %p88 = scmp.ne.s32.totalorder %s76, %s77
      %p89 = scmp.eq.s32.totalorder %s25, 1
      %p90 = por %p88, %p89
      %p92 = scmp.ne.s32.totalorder %s77, %s91
      %p93 = scmp.eq.s32.totalorder %s25, 0
      %p94 = por %p92, %p93
      %s96 = sadd.s32 %s95, 1
      %p99 = scmp.eq.s32.totalorder %s19, 1
      %p100 = scmp.ne.s32.totalorder %s95, %s97
      %p101 = scmp.eq.s32.totalorder %s19, 0
      %p102 = por %p100, %p101
      %p103 = scmp.ne.s32.totalorder %s95, %s97
      %p104 = scmp.eq.s32.totalorder %s24, 1
      %p105 = por %p103, %p104
      %p106 = scmp.ne.s32.totalorder %s97, %s98
      %p107 = scmp.eq.s32.totalorder %s24, 0
      %p108 = por %p106, %p107
      %p109 = scmp.ne.s32.totalorder %s97, %s98
      %p110 = scmp.eq.s32.totalorder %s25, 1
      %p111 = por %p109, %p110
      %p113 = scmp.ne.s32.totalorder %s98, %s112
      %p114 = scmp.eq.s32.totalorder %s25, 0
      %p115 = por %p113, %p114
      %s117 = sadd.s32 %s116, 1
      %p120 = scmp.eq.s32.totalorder %s19, 1
      %p121 = scmp.ne.s32.totalorder %s116, %s118
      %p122 = scmp.eq.s32.totalorder %s19, 0
      %p123 = por %p121, %p122
      %p124 = scmp.ne.s32.totalorder %s116, %s118
      %p125 = scmp.eq.s32.totalorder %s24, 1
      %p126 = por %p124, %p125
      %p127 = scmp.ne.s32.totalorder %s118, %s119
      %p128 = scmp.eq.s32.totalorder %s24, 0
      %p129 = por %p127, %p128
      %p130 = scmp.ne.s32.totalorder %s118, %s119
      %p131 = scmp.eq.s32.totalorder %s25, 1
      %p132 = por %p130, %p131
      %p134 = scmp.ne.s32.totalorder %s119, %s133
      %p135 = scmp.eq.s32.totalorder %s25, 0
      %p136 = por %p134, %p135
      %s137 = ssub.s32 %s19, %s26
      %p138 = scmp.eq.s32.totalorder %s137, 0
      %s140 = sadd.s32 %s139, 1
      %s141 = scalar_select %p138, %s139, %s140
      %p144 = pneg %p138
      %p145 = scmp.eq.s32.totalorder %s19, 1
      %p146 = por %p144, %p145
      %p147 = scmp.ne.s32.totalorder %s139, %s142
      %p148 = scmp.eq.s32.totalorder %s19, 0
      %p149 = por %p147, %p148
      %p150 = scmp.ne.s32.totalorder %s139, %s142
      %p151 = scmp.eq.s32.totalorder %s24, 1
      %p152 = por %p150, %p151
      %p153 = scmp.ne.s32.totalorder %s142, %s143
      %p154 = scmp.eq.s32.totalorder %s24, 0
      %p155 = por %p153, %p154
      %p156 = scmp.ne.s32.totalorder %s142, %s143
      %p157 = scmp.eq.s32.totalorder %s25, 1
      %p158 = por %p156, %p157
      %p160 = scmp.ne.s32.totalorder %s143, %s159
      %p161 = scmp.eq.s32.totalorder %s25, 0
      %p162 = por %p160, %p161
      %p163 = scmp.le.s32.totalorder 1, %s19
      %p164 = scmp.lt.s32.totalorder %s19, 3
      %p165 = pnand %p163, %p164
      %p166 = pneg %p165
      // Predicated region
      $region9: #{tpu_custom_call.1} parent=5 // pred_check
        _
      $region10: #{tpu_custom_call.1} parent=5 // pred_check_branch
        %168 = sbr.rel (%p165) target = $region12
      $region11: #{tpu_custom_call.1} parent=5 // pred_region
        %s169 = ssub.s32 %s19, 1
        // Predicated region
        $region13: #{tpu_custom_call.1} parent=11 // pred_check
          %p170 = pneg %p66
        $region14: #{tpu_custom_call.1} parent=11 // pred_check_branch
          %172 = sbr.rel (%p170) target = $region16
        $region15: #{tpu_custom_call.1} parent=11 // pred_region
          %s174 = ssub.s32 3072, 3072
          %175 = vsyncadd [#allocation6], %s174
          %s176 = sshll.u32 [#allocation5], 4
          %s177 = int_to_ptr.vmem [resolvable:$true] %s176
          %182 = dma.hbm_to_vmem [thread:$0]  %s1, 3072, %s177, [#allocation6], 192, 192, 12
        $region16: #{tpu_custom_call.1} parent=11 // pred_fallthru
          _
        // Predicated region
        $region17: #{tpu_custom_call.1} parent=11 // pred_check
          %p183 = pneg %p87
        $region18: #{tpu_custom_call.1} parent=11 // pred_check_branch
          %185 = sbr.rel (%p183) target = $region20
        $region19: #{tpu_custom_call.1} parent=11 // pred_region
          %s187 = ssub.s32 48, 48
          %188 = vsyncadd [#allocation6], %s187
          %s190 = sshll.u32 [#allocation7], 4
          %s191 = int_to_ptr.vmem [resolvable:$true] %s190
          %193 = dma.hbm_to_vmem [thread:$0]  %s2, 48, %s191, [#allocation6]
        $region20: #{tpu_custom_call.1} parent=11 // pred_fallthru
          _
        // Predicated region
        $region21: #{tpu_custom_call.1} parent=11 // pred_check
          %p194 = pneg %p108
        $region22: #{tpu_custom_call.1} parent=11 // pred_check_branch
          %196 = sbr.rel (%p194) target = $region24
        $region23: #{tpu_custom_call.1} parent=11 // pred_region
          %s198 = ssub.s32 1024, 1024
          %199 = vsyncadd [#allocation9], %s198
          %s200 = sshll.u32 [#allocation8], 4
          %s201 = int_to_ptr.vmem [resolvable:$true] %s200
          %206 = dma.hbm_to_vmem [thread:$0]  %s3, 1024, %s201, [#allocation9], 64, 64, 4
        $region24: #{tpu_custom_call.1} parent=11 // pred_fallthru
          _
        // Predicated region
        $region25: #{tpu_custom_call.1} parent=11 // pred_check
          %p207 = pneg %p129
        $region26: #{tpu_custom_call.1} parent=11 // pred_check_branch
          %209 = sbr.rel (%p207) target = $region28
        $region27: #{tpu_custom_call.1} parent=11 // pred_region
          %s211 = ssub.s32 16, 16
          %212 = vsyncadd [#allocation9], %s211
          %s214 = sshll.u32 [#allocation10], 4
          %s215 = int_to_ptr.vmem [resolvable:$true] %s214
          %217 = dma.hbm_to_vmem [thread:$0]  %s4, 16, %s215, [#allocation9]
        $region28: #{tpu_custom_call.1} parent=11 // pred_fallthru
          _
      $region12: #{tpu_custom_call.1} parent=5 // pred_fallthru
        _
      %p218 = scmp.lt.s32.totalorder %s19, 2
      // Predicated region
      $region29: #{tpu_custom_call.1} parent=5 // pred_check
        %p219 = pneg %p218
      $region30: #{tpu_custom_call.1} parent=5 // pred_check_branch
        %221 = sbr.rel (%p219) target = $region32
      $region31: #{tpu_custom_call.1} parent=5 // pred_region
        // Predicated region
        $region33: #{tpu_custom_call.1} parent=31 // pred_check
          %p222 = pneg %p39
        $region34: #{tpu_custom_call.1} parent=31 // pred_check_branch
          %224 = sbr.rel (%p222) target = $region36
        $region35: #{tpu_custom_call.1} parent=31 // pred_region
          %s225 = sand.u32 %s29, 1
          %s226 = scalar_lea.sflag [#allocation3], %s225
          %s227 = sand.u32 %s29, 1
          %s228 = smul.addr %s227, 16
          %s229 = scalar_lea.vmem [#allocation2], %s228
          %s231 = ssub.s32 256, 256
          %232 = vsyncadd %s226, %s231
          %s233 = smul.addr %s19, 2
          %s234 = smul.addr %s233, 128
          %s235 = scalar_lea.hbm %s0, %s234
          %s236 = sshll.u32 %s229, 4
          %s237 = int_to_ptr.vmem [resolvable:$true] %s236
          %242 = dma.hbm_to_vmem [thread:$0]  %s235, 256, %s237, %s226, 128, 128, 8
        $region36: #{tpu_custom_call.1} parent=31 // pred_fallthru
          _
      $region32: #{tpu_custom_call.1} parent=5 // pred_fallthru
        _
      %p243 = scmp.le.s32.totalorder 1, %s19
      %p244 = scmp.lt.s32.totalorder %s19, 3
      %p245 = pnand %p243, %p244
      %p246 = pneg %p245
      // Predicated region
      $region37: #{tpu_custom_call.1} parent=5 // pred_check
        _
      $region38: #{tpu_custom_call.1} parent=5 // pred_check_branch
        %248 = sbr.rel (%p245) target = $region40
      $region39: #{tpu_custom_call.1} parent=5 // pred_region
        %s249 = ssub.s32 %s19, 1
        %s250 = sand.u32 %s32, 1
        %s251 = scalar_lea.sflag [#allocation3], %s250
        %s252 = sand.u32 %s32, 1
        %s253 = smul.addr %s252, 16
        %s254 = scalar_lea.vmem [#allocation2], %s253
        // Predicated region
        $region41: #{tpu_custom_call.1} parent=39 // pred_check
          %p255 = pneg %p45
        $region42: #{tpu_custom_call.1} parent=39 // pred_check_branch
          %257 = sbr.rel (%p255) target = $region44
        $region43: #{tpu_custom_call.1} parent=39 // pred_region
          %258 = dma.done %s251, 256
        $region44: #{tpu_custom_call.1} parent=39 // pred_fallthru
          _
        // Predicated region
        $region45: #{tpu_custom_call.1} parent=39 // pred_check
          %p259 = pneg %p66
        $region46: #{tpu_custom_call.1} parent=39 // pred_check_branch
          %261 = sbr.rel (%p259) target = $region48
        $region47: #{tpu_custom_call.1} parent=39 // pred_region
          %262 = dma.done [#allocation6], 3072
        $region48: #{tpu_custom_call.1} parent=39 // pred_fallthru
          _
        // Predicated region
        $region49: #{tpu_custom_call.1} parent=39 // pred_check
          %p263 = pneg %p87
        $region50: #{tpu_custom_call.1} parent=39 // pred_check_branch
          %265 = sbr.rel (%p263) target = $region52
        $region51: #{tpu_custom_call.1} parent=39 // pred_region
          %266 = dma.done [#allocation6], 48
        $region52: #{tpu_custom_call.1} parent=39 // pred_fallthru
          _
        // Predicated region
        $region53: #{tpu_custom_call.1} parent=39 // pred_check
          %p267 = pneg %p108
        $region54: #{tpu_custom_call.1} parent=39 // pred_check_branch
          %269 = sbr.rel (%p267) target = $region56
        $region55: #{tpu_custom_call.1} parent=39 // pred_region
          %270 = dma.done [#allocation9], 1024
        $region56: #{tpu_custom_call.1} parent=39 // pred_fallthru
          _
        // Predicated region
        $region57: #{tpu_custom_call.1} parent=39 // pred_check
          %p271 = pneg %p129
        $region58: #{tpu_custom_call.1} parent=39 // pred_check_branch
          %273 = sbr.rel (%p271) target = $region60
        $region59: #{tpu_custom_call.1} parent=39 // pred_region
          %274 = dma.done [#allocation9], 16
        $region60: #{tpu_custom_call.1} parent=39 // pred_fallthru
          _
        %s275 = sand.u32 %s32, 1
        %s276 = scalar_lea.sflag [#allocation3], %s275
        %s277 = sand.u32 %s32, 1
        %s278 = smul.addr %s277, 16
        %s279 = scalar_lea.vmem [#allocation2], %s278
        %p280 = pneg %p45
        %p281 = pneg %p42
        %p282 = pneg %p66
        %p283 = pneg %p63
        %p284 = pneg %p87
        %p285 = pneg %p84
        %p286 = pneg %p108
        %p287 = pneg %p105
        %p288 = pneg %p129
        %p289 = pneg %p126
        %p290 = pneg %p155
        %p291 = pneg %p152
        %s292 = sand.u32 %s142, 1
        %s293 = scalar_lea.sflag [#allocation4], %s292
        %s294 = sand.u32 %s142, 1
        %s295 = smul.addr %s294, 16
        %s296 = scalar_lea.vmem [#allocation11], %s295
        %v298 = vld [vmem:[%s254] sm:$0xff]
        %v299 = vld [vmem:[%s254 + $0x8] sm:$0xff]
        %v300 = vpack.c.bf16 %v299, %v298
        %v301 = vld [vmem:[#allocation5] sm:$0xff]
        %v302 = vld [vmem:[#allocation5 + $0x8] sm:$0xf]
        %v303 = vld [vmem:[#allocation5 + $0xc] sm:$0xff]
        %v304 = vld [vmem:[#allocation5 + $0x14] sm:$0xf]
        %v305 = vld [vmem:[#allocation5 + $0x18] sm:$0xff]
        %v306 = vld [vmem:[#allocation5 + $0x20] sm:$0xf]
        %v307 = vld [vmem:[#allocation5 + $0x24] sm:$0xff]
        %v308 = vld [vmem:[#allocation5 + $0x2c] sm:$0xf]
        %v309 = vld [vmem:[#allocation5 + $0x30] sm:$0xff]
        %v310 = vld [vmem:[#allocation5 + $0x38] sm:$0xf]
        %v311 = vld [vmem:[#allocation5 + $0x3c] sm:$0xff]
        %v312 = vld [vmem:[#allocation5 + $0x44] sm:$0xf]
        %v313 = vld [vmem:[#allocation5 + $0x48] sm:$0xff]
        %v314 = vld [vmem:[#allocation5 + $0x50] sm:$0xf]
        %v315 = vld [vmem:[#allocation5 + $0x54] sm:$0xff]
        %v316 = vld [vmem:[#allocation5 + $0x5c] sm:$0xf]
        %v317 = vld [vmem:[#allocation5 + $0x60] sm:$0xff]
        %v318 = vld [vmem:[#allocation5 + $0x68] sm:$0xf]
        %v319 = vld [vmem:[#allocation5 + $0x6c] sm:$0xff]
        %v320 = vld [vmem:[#allocation5 + $0x74] sm:$0xf]
        %v321 = vld [vmem:[#allocation5 + $0x78] sm:$0xff]
        %v322 = vld [vmem:[#allocation5 + $0x80] sm:$0xf]
        %v323 = vld [vmem:[#allocation5 + $0x84] sm:$0xff]
        %v324 = vld [vmem:[#allocation5 + $0x8c] sm:$0xf]
        %v325 = vld [vmem:[#allocation5 + $0x90] sm:$0xff]
        %v326 = vld [vmem:[#allocation5 + $0x98] sm:$0xf]
        %v327 = vld [vmem:[#allocation5 + $0x9c] sm:$0xff]
        %v328 = vld [vmem:[#allocation5 + $0xa4] sm:$0xf]
        %v329 = vld [vmem:[#allocation5 + $0xa8] sm:$0xff]
        %v330 = vld [vmem:[#allocation5 + $0xb0] sm:$0xf]
        %v331 = vld [vmem:[#allocation5 + $0xb4] sm:$0xff]
        %v332 = vld [vmem:[#allocation5 + $0xbc] sm:$0xf]
        %v333 = vld [vmem:[#allocation7] sm:$0x7]
        %v335 = vlaneseq
        %v336 = vshrl.u32 %v335, 7
        %v337 = vsub.s32 0, %v336
        %v338 = vrot.slane %v333, %v337
        %v339 = vlaneseq
        %v340 = vshrl.u32 %v339, 7
        %v341 = vsub.s32 1, %v340
        %v342 = vrot.slane %v333, %v341
        %v343 = vlaneseq
        %v344 = vshrl.u32 %v343, 7
        %v345 = vsub.s32 2, %v344
        %v346 = vrot.slane %v333, %v345
        %v382 = vunpack.c.l.b16 %v301
        %v383 = vunpack.c.h.b16 %v301
        %v384 = vunpack.c.l.b16 %v302
        %v385 = vunpack.c.l.b16 %v303
        %v386 = vunpack.c.h.b16 %v303
        %v387 = vunpack.c.l.b16 %v304
        %v388 = vunpack.c.l.b16 %v305
        %v389 = vunpack.c.h.b16 %v305
        %v390 = vunpack.c.l.b16 %v306
        %v391 = vunpack.c.l.b16 %v307
        %v392 = vunpack.c.h.b16 %v307
        %v393 = vunpack.c.l.b16 %v308
        %v394 = vunpack.c.l.b16 %v309
        %v395 = vunpack.c.h.b16 %v309
        %v396 = vunpack.c.l.b16 %v310
        %v397 = vunpack.c.l.b16 %v311
        %v398 = vunpack.c.h.b16 %v311
        %v399 = vunpack.c.l.b16 %v312
        %v400 = vunpack.c.l.b16 %v313
        %v401 = vunpack.c.h.b16 %v313
        %v402 = vunpack.c.l.b16 %v314
        %v403 = vunpack.c.l.b16 %v315
        %v404 = vunpack.c.h.b16 %v315
        %v405 = vunpack.c.l.b16 %v316
        %v406 = vunpack.c.l.b16 %v317
        %v407 = vunpack.c.h.b16 %v317
        %v408 = vunpack.c.l.b16 %v318
        %v409 = vunpack.c.l.b16 %v319
        %v410 = vunpack.c.h.b16 %v319
        %v411 = vunpack.c.l.b16 %v320
        %v412 = vunpack.c.l.b16 %v321
        %v413 = vunpack.c.h.b16 %v321
        %v414 = vunpack.c.l.b16 %v322
        %v415 = vunpack.c.l.b16 %v323
        %v416 = vunpack.c.h.b16 %v323
        %v417 = vunpack.c.l.b16 %v324
        %v418 = vunpack.c.l.b16 %v325
        %v419 = vunpack.c.h.b16 %v325
        %v420 = vunpack.c.l.b16 %v326
        %v421 = vunpack.c.l.b16 %v327
        %v422 = vunpack.c.h.b16 %v327
        %v423 = vunpack.c.l.b16 %v328
        %v424 = vunpack.c.l.b16 %v329
        %v425 = vunpack.c.h.b16 %v329
        %v426 = vunpack.c.l.b16 %v330
        %v427 = vunpack.c.l.b16 %v331
        %v428 = vunpack.c.h.b16 %v331
        %v429 = vunpack.c.l.b16 %v332
        %v430 = vpack.c.b16 %v385, %v382
        %v431 = vpack.c.b16 %v386, %v383
        %v432 = vpack.c.b16 %v387, %v384
        %v433 = vpack.c.b16 %v391, %v388
        %v434 = vpack.c.b16 %v392, %v389
        %v435 = vpack.c.b16 %v393, %v390
        %v436 = vpack.c.b16 %v397, %v394
        %v437 = vpack.c.b16 %v398, %v395
        %v438 = vpack.c.b16 %v399, %v396
        %v439 = vpack.c.b16 %v403, %v400
        %v440 = vpack.c.b16 %v404, %v401
        %v441 = vpack.c.b16 %v405, %v402
        %v442 = vpack.c.b16 %v409, %v406
        %v443 = vpack.c.b16 %v410, %v407
        %v444 = vpack.c.b16 %v411, %v408
        %v445 = vpack.c.b16 %v415, %v412
        %v446 = vpack.c.b16 %v416, %v413
        %v447 = vpack.c.b16 %v417, %v414
        %v448 = vpack.c.b16 %v421, %v418
        %v449 = vpack.c.b16 %v422, %v419
        %v450 = vpack.c.b16 %v423, %v420
        %v451 = vpack.c.b16 %v427, %v424
        %v452 = vpack.c.b16 %v428, %v425
        %v453 = vpack.c.b16 %v429, %v426
        %478 = vmatprep.subr.bf16.mxu0 %v431
        %479 = vmatpush1.bf16.msra.mxu0 %v430
        %480 = vmatprep.subr.bf16.mxu0 %v434
        %481 = vmatpush1.bf16.msra.mxu0 %v433
        %482 = vmatprep.subr.bf16.mxu0 %v437
        %483 = vmatpush1.bf16.msra.mxu0 %v436
        %484 = vmatprep.subr.bf16.mxu0 %v440
        %485 = vmatpush1.bf16.msra.mxu0 %v439
        %486 = vmatprep.subr.bf16.mxu0 %v443
        %487 = vmatpush1.bf16.msra.mxu0 %v442
        %488 = vmatprep.subr.bf16.mxu0 %v446
        %489 = vmatpush1.bf16.msra.mxu0 %v445
        %490 = vmatprep.subr.bf16.mxu0 %v449
        %491 = vmatpush1.bf16.msra.mxu0 %v448
        %492 = vmatprep.subr.bf16.mxu0 %v452
        %493 = vmatpush1.bf16.msra.mxu0 %v451
        %494 = vmatprep.subr.bf16.mxu0 0
        %495 = vmatpush1.bf16.msra.mxu0 0
        %496 = vmatprep.subr.bf16.mxu0 0
        %497 = vmatpush1.bf16.msra.mxu0 0
        %498 = vmatprep.subr.bf16.mxu0 0
        %499 = vmatpush1.bf16.msra.mxu0 0
        %500 = vmatprep.subr.bf16.mxu0 0
        %501 = vmatpush1.bf16.msra.mxu0 0
        %502 = vmatprep.subr.bf16.mxu0 0
        %503 = vmatpush1.bf16.msra.mxu0 0
        %504 = vmatprep.subr.bf16.mxu0 0
        %505 = vmatpush1.bf16.msra.mxu0 0
        %506 = vmatprep.subr.bf16.mxu0 0
        %507 = vmatpush1.bf16.msra.mxu0 0
        %508 = vmatprep.subr.bf16.mxu0 0
        %509 = vmatpush1.bf16.msra.mxu0 0
        %510 = vmatprep.mubr.bf16.mxu0 0
        %511 = vmatmul.mubr.bf16.gmra.mrb[0].mxu0 %v300
        %v512 = vpop.f32.mrb[0].mxu0
        %v513 = vadd.f32 %v338, %v512
        %v514 = vpop.f32.mrb[0].mxu0
        %v515 = vadd.f32 %v342, %v514
        %v516 = vpop.f32.mrb[0].mxu0
        %v517 = vadd.f32 %v338, %v516
        %v518 = vpop.f32.mrb[0].mxu0
        %v519 = vadd.f32 %v342, %v518
        %520 = vdwg.mxu0
        %521 = vmatprep.subr.bf16.mxu0 0
        %522 = vmatpush1.bf16.msra.mxu0 %v432
        %523 = vmatprep.subr.bf16.mxu0 0
        %524 = vmatpush1.bf16.msra.mxu0 %v435
        %525 = vmatprep.subr.bf16.mxu0 0
        %526 = vmatpush1.bf16.msra.mxu0 %v438
        %527 = vmatprep.subr.bf16.mxu0 0
        %528 = vmatpush1.bf16.msra.mxu0 %v441
        %529 = vmatprep.subr.bf16.mxu0 0
        %530 = vmatpush1.bf16.msra.mxu0 %v444
        %531 = vmatprep.subr.bf16.mxu0 0
        %532 = vmatpush1.bf16.msra.mxu0 %v447
        %533 = vmatprep.subr.bf16.mxu0 0
        %534 = vmatpush1.bf16.msra.mxu0 %v450
        %535 = vmatprep.subr.bf16.mxu0 0
        %536 = vmatpush1.bf16.msra.mxu0 %v453
        %537 = vmatprep.subr.bf16.mxu0 0
        %538 = vmatpush1.bf16.msra.mxu0 0
        %539 = vmatprep.subr.bf16.mxu0 0
        %540 = vmatpush1.bf16.msra.mxu0 0
        %541 = vmatprep.subr.bf16.mxu0 0
        %542 = vmatpush1.bf16.msra.mxu0 0
        %543 = vmatprep.subr.bf16.mxu0 0
        %544 = vmatpush1.bf16.msra.mxu0 0
        %545 = vmatprep.subr.bf16.mxu0 0
        %546 = vmatpush1.bf16.msra.mxu0 0
        %547 = vmatprep.subr.bf16.mxu0 0
        %548 = vmatpush1.bf16.msra.mxu0 0
        %549 = vmatprep.subr.bf16.mxu0 0
        %550 = vmatpush1.bf16.msra.mxu0 0
        %551 = vmatprep.subr.bf16.mxu0 0
        %552 = vmatpush1.bf16.msra.mxu0 0
        %553 = vmatprep.mubr.bf16.mxu0 0
        %554 = vmatmul.mubr.bf16.gmra.mrb[0].mxu0 %v300
        %v555 = vpop.f32.mrb[0].mxu0
        %v556 = vadd.f32 %v346, %v555
        %v557 = vpop.f32.mrb[0].mxu0
        %v558 = vpop.f32.mrb[0].mxu0
        %v559 = vadd.f32 %v346, %v558
        %v560 = vpop.f32.mrb[0].mxu0
        %561 = vdwg.mxu0
        %v562 = vpack.c.bf16 %v517, %v513
        %v563 = vpack.c.bf16 %v519, %v515
        %v564 = vpack.c.bf16 %v559, %v556
        %vm565 = vcmask 523264
        %v567 = vsel %vm565, %v562, 0
        %v570 = vsel %vm565, %v563, 0
        %572 = vmatprep.subr.bf16.mxu0 0
        %573 = vmatpush1.bf16.xpose.msra.mxu0 %v570
        %574 = vmatprep.subr.bf16.mxu0 0
        %575 = vmatpush1.bf16.xpose.msra.mxu0 0
        %576 = vmatprep.subr.bf16.mxu0 0
        %577 = vmatpush1.bf16.xpose.msra.mxu0 0
        %578 = vmatprep.subr.bf16.mxu0 0
        %579 = vmatpush1.bf16.xpose.msra.mxu0 0
        %580 = vmatprep.subr.bf16.mxu0 0
        %581 = vmatpush1.bf16.xpose.msra.mxu0 0
        %582 = vmatprep.subr.bf16.mxu0 0
        %583 = vmatpush1.bf16.xpose.msra.mxu0 0
        %584 = vmatprep.subr.bf16.mxu0 0
        %585 = vmatpush1.bf16.xpose.msra.mxu0 0
        %586 = vmatprep.subr.bf16.mxu0 0
        %587 = vmatpush1.bf16.xpose.msra.mxu0 0
        %588 = vmatprep.subr.bf16.mxu0 0
        %589 = vmatpush1.bf16.xpose.msra.mxu0 0
        %590 = vmatprep.subr.bf16.mxu0 0
        %591 = vmatpush1.bf16.xpose.msra.mxu0 0
        %592 = vmatprep.subr.bf16.mxu0 0
        %593 = vmatpush1.bf16.xpose.msra.mxu0 0
        %594 = vmatprep.subr.bf16.mxu0 0
        %595 = vmatpush1.bf16.xpose.msra.mxu0 0
        %596 = vmatprep.subr.bf16.mxu0 0
        %597 = vmatpush1.bf16.xpose.msra.mxu0 0
        %598 = vmatprep.subr.bf16.mxu0 0
        %599 = vmatpush1.bf16.xpose.msra.mxu0 0
        %600 = vmatprep.subr.bf16.mxu0 0
        %601 = vmatpush1.bf16.xpose.msra.mxu0 0
        %602 = vmatprep.subr.bf16.mxu0 0
        %603 = vmatpush1.bf16.xpose.msra.mxu0 0
        %604 = vmatprep.mubr.bf16.mxu0 0
        %605 = vmatmul.mubr.bf16.gmra.mrb[0].mxu0 %v567
        %v606 = vpop.f32.mrb[0].mxu0
        %v607 = vadd.f32 0.0, %v606
        %v608 = vpop.f32.mrb[0].mxu0
        %v609 = vpop.f32.mrb[0].mxu0
        %v610 = vadd.f32 0.0, %v609
        %v611 = vpop.f32.mrb[0].mxu0
        %612 = vdwg.mxu0
        %vm613 = vcmask 130048
        %v614 = vsel %vm613, %v607, -inf
        %615 = vmax.xlane.f32.xlu0 %v614
        %v616 = vpop.xlane.xlu0 %615
        %v617 = vsel %vm613, %v610, -inf
        %618 = vmax.xlane.f32.xlu0 %v617
        %v619 = vpop.xlane.xlu0 %618
        %v620 = vsub.f32 %v607, %v616
        %v621 = vsub.f32 %v610, %v619
        %v622 = vmul.f32 %v620, 1.442695
        %v623 = vpow.pop %v622
        %v624 = vmul.f32 %v621, 1.442695
        %v625 = vpow.pop %v624
        %v626 = vsel %vm613, %v623, 0.0
        %627 = vadd.xlane.f32.xlu0 %v626
        %v628 = vpop.xlane.xlu0 %627
        %v629 = vsel %vm613, %v625, 0.0
        %630 = vadd.xlane.f32.xlu0 %v629
        %v631 = vpop.xlane.xlu0 %630
        %v632 = vrcp.pop %v628
        %v633 = vrcp.pop %v631
        %v634 = vmul.f32 %v623, %v632
        %v635 = vmul.f32 %v625, %v633
        %v636 = vpack.c.bf16 %v635, %v634
        %v638 = vsel %vm613, %v636, 0
        %640 = vmatprep.subr.bf16.mxu0 0
        %641 = vmatpush1.bf16.msra.mxu0 %v564
        %642 = vmatprep.subr.bf16.mxu0 0
        %643 = vmatpush1.bf16.msra.mxu0 0
        %644 = vmatprep.subr.bf16.mxu0 0
        %645 = vmatpush1.bf16.msra.mxu0 0
        %646 = vmatprep.subr.bf16.mxu0 0
        %647 = vmatpush1.bf16.msra.mxu0 0
        %648 = vmatprep.subr.bf16.mxu0 0
        %649 = vmatpush1.bf16.msra.mxu0 0
        %650 = vmatprep.subr.bf16.mxu0 0
        %651 = vmatpush1.bf16.msra.mxu0 0
        %652 = vmatprep.subr.bf16.mxu0 0
        %653 = vmatpush1.bf16.msra.mxu0 0
        %654 = vmatprep.subr.bf16.mxu0 0
        %655 = vmatpush1.bf16.msra.mxu0 0
        %656 = vmatprep.subr.bf16.mxu0 0
        %657 = vmatpush1.bf16.msra.mxu0 0
        %658 = vmatprep.subr.bf16.mxu0 0
        %659 = vmatpush1.bf16.msra.mxu0 0
        %660 = vmatprep.subr.bf16.mxu0 0
        %661 = vmatpush1.bf16.msra.mxu0 0
        %662 = vmatprep.subr.bf16.mxu0 0
        %663 = vmatpush1.bf16.msra.mxu0 0
        %664 = vmatprep.subr.bf16.mxu0 0
        %665 = vmatpush1.bf16.msra.mxu0 0
        %666 = vmatprep.subr.bf16.mxu0 0
        %667 = vmatpush1.bf16.msra.mxu0 0
        %668 = vmatprep.subr.bf16.mxu0 0
        %669 = vmatpush1.bf16.msra.mxu0 0
        %670 = vmatprep.subr.bf16.mxu0 0
        %671 = vmatpush1.bf16.msra.mxu0 0
        %672 = vmatprep.mubr.bf16.mxu0 0
        %673 = vmatmul.mubr.bf16.gmra.mrb[0].mxu0 %v638
        %v674 = vpop.f32.mrb[0].mxu0
        %v675 = vadd.f32 0.0, %v674
        %v676 = vpop.f32.mrb[0].mxu0
        %v677 = vpop.f32.mrb[0].mxu0
        %v678 = vadd.f32 0.0, %v677
        %v679 = vpop.f32.mrb[0].mxu0
        %680 = vdwg.mxu0
        %v681 = vpack.c.bf16 %v678, %v675
        %683 = vrot.lane.b32.xlu0 %v562, 64
        %v684 = vpop.permute.xlu0 %683
        %686 = vrot.lane.b32.xlu0 %v563, 64
        %v687 = vpop.permute.xlu0 %686
        %v689 = vsel %vm565, %v684, 0
        %v692 = vsel %vm565, %v687, 0
        %694 = vmatprep.subr.bf16.mxu0 0
        %695 = vmatpush1.bf16.xpose.msra.mxu0 %v692
        %696 = vmatprep.subr.bf16.mxu0 0
        %697 = vmatpush1.bf16.xpose.msra.mxu0 0
        %698 = vmatprep.subr.bf16.mxu0 0
        %699 = vmatpush1.bf16.xpose.msra.mxu0 0
        %700 = vmatprep.subr.bf16.mxu0 0
        %701 = vmatpush1.bf16.xpose.msra.mxu0 0
        %702 = vmatprep.subr.bf16.mxu0 0
        %703 = vmatpush1.bf16.xpose.msra.mxu0 0
        %704 = vmatprep.subr.bf16.mxu0 0
        %705 = vmatpush1.bf16.xpose.msra.mxu0 0
        %706 = vmatprep.subr.bf16.mxu0 0
        %707 = vmatpush1.bf16.xpose.msra.mxu0 0
        %708 = vmatprep.subr.bf16.mxu0 0
        %709 = vmatpush1.bf16.xpose.msra.mxu0 0
        %710 = vmatprep.subr.bf16.mxu0 0
        %711 = vmatpush1.bf16.xpose.msra.mxu0 0
        %712 = vmatprep.subr.bf16.mxu0 0
        %713 = vmatpush1.bf16.xpose.msra.mxu0 0
        %714 = vmatprep.subr.bf16.mxu0 0
        %715 = vmatpush1.bf16.xpose.msra.mxu0 0
        %716 = vmatprep.subr.bf16.mxu0 0
        %717 = vmatpush1.bf16.xpose.msra.mxu0 0
        %718 = vmatprep.subr.bf16.mxu0 0
        %719 = vmatpush1.bf16.xpose.msra.mxu0 0
        %720 = vmatprep.subr.bf16.mxu0 0
        %721 = vmatpush1.bf16.xpose.msra.mxu0 0
        %722 = vmatprep.subr.bf16.mxu0 0
        %723 = vmatpush1.bf16.xpose.msra.mxu0 0
        %724 = vmatprep.subr.bf16.mxu0 0
        %725 = vmatpush1.bf16.xpose.msra.mxu0 0
        %726 = vmatprep.mubr.bf16.mxu0 0
        %727 = vmatmul.mubr.bf16.gmra.mrb[0].mxu0 %v689
        %v728 = vpop.f32.mrb[0].mxu0
        %v729 = vadd.f32 0.0, %v728
        %v730 = vpop.f32.mrb[0].mxu0
        %v731 = vpop.f32.mrb[0].mxu0
        %v732 = vadd.f32 0.0, %v731
        %v733 = vpop.f32.mrb[0].mxu0
        %734 = vdwg.mxu0
        %v735 = vsel %vm613, %v729, -inf
        %736 = vmax.xlane.f32.xlu0 %v735
        %v737 = vpop.xlane.xlu0 %736
        %v738 = vsel %vm613, %v732, -inf
        %739 = vmax.xlane.f32.xlu0 %v738
        %v740 = vpop.xlane.xlu0 %739
        %v741 = vsub.f32 %v729, %v737
        %v742 = vsub.f32 %v732, %v740
        %v743 = vmul.f32 %v741, 1.442695
        %v744 = vpow.pop %v743
        %v745 = vmul.f32 %v742, 1.442695
        %v746 = vpow.pop %v745
        %v747 = vsel %vm613, %v744, 0.0
        %748 = vadd.xlane.f32.xlu0 %v747
        %v749 = vpop.xlane.xlu0 %748
        %v750 = vsel %vm613, %v746, 0.0
        %751 = vadd.xlane.f32.xlu0 %v750
        %v752 = vpop.xlane.xlu0 %751
        %v753 = vrcp.pop %v749
        %v754 = vrcp.pop %v752
        %v755 = vmul.f32 %v744, %v753
        %v756 = vmul.f32 %v746, %v754
        %v757 = vpack.c.bf16 %v756, %v755
        %759 = vrot.lane.b32.xlu0 %v564, 64
        %v760 = vpop.permute.xlu0 %759
        %v763 = vsel %vm613, %v757, 0
        %765 = vmatprep.subr.bf16.mxu0 0
        %766 = vmatpush1.bf16.msra.mxu0 %v760
        %767 = vmatprep.subr.bf16.mxu0 0
        %768 = vmatpush1.bf16.msra.mxu0 0
        %769 = vmatprep.subr.bf16.mxu0 0
        %770 = vmatpush1.bf16.msra.mxu0 0
        %771 = vmatprep.subr.bf16.mxu0 0
        %772 = vmatpush1.bf16.msra.mxu0 0
        %773 = vmatprep.subr.bf16.mxu0 0
        %774 = vmatpush1.bf16.msra.mxu0 0
        %775 = vmatprep.subr.bf16.mxu0 0
        %776 = vmatpush1.bf16.msra.mxu0 0
        %777 = vmatprep.subr.bf16.mxu0 0
        %778 = vmatpush1.bf16.msra.mxu0 0
        %779 = vmatprep.subr.bf16.mxu0 0
        %780 = vmatpush1.bf16.msra.mxu0 0
        %781 = vmatprep.subr.bf16.mxu0 0
        %782 = vmatpush1.bf16.msra.mxu0 0
        %783 = vmatprep.subr.bf16.mxu0 0
        %784 = vmatpush1.bf16.msra.mxu0 0
        %785 = vmatprep.subr.bf16.mxu0 0
        %786 = vmatpush1.bf16.msra.mxu0 0
        %787 = vmatprep.subr.bf16.mxu0 0
        %788 = vmatpush1.bf16.msra.mxu0 0
        %789 = vmatprep.subr.bf16.mxu0 0
        %790 = vmatpush1.bf16.msra.mxu0 0
        %791 = vmatprep.subr.bf16.mxu0 0
        %792 = vmatpush1.bf16.msra.mxu0 0
        %793 = vmatprep.subr.bf16.mxu0 0
        %794 = vmatpush1.bf16.msra.mxu0 0
        %795 = vmatprep.subr.bf16.mxu0 0
        %796 = vmatpush1.bf16.msra.mxu0 0
        %797 = vmatprep.mubr.bf16.mxu0 0
        %798 = vmatmul.mubr.bf16.gmra.mrb[0].mxu0 %v763
        %v799 = vpop.f32.mrb[0].mxu0
        %v800 = vadd.f32 0.0, %v799
        %v801 = vpop.f32.mrb[0].mxu0
        %v802 = vpop.f32.mrb[0].mxu0
        %v803 = vadd.f32 0.0, %v802
        %v804 = vpop.f32.mrb[0].mxu0
        %805 = vdwg.mxu0
        %v806 = vpack.c.bf16 %v803, %v800
        %808 = vrot.lane.b32.xlu0 %v806, 64
        %v809 = vpop.permute.xlu0 %808
        %v812 = vsel %vm565, %v681, %v809
        %v814 = vld [vmem:[#allocation8] sm:$0xf]
        %v815 = vld [vmem:[#allocation8 + $0x4] sm:$0xf]
        %v816 = vld [vmem:[#allocation8 + $0x8] sm:$0xf]
        %v817 = vld [vmem:[#allocation8 + $0xc] sm:$0xf]
        %v818 = vld [vmem:[#allocation8 + $0x10] sm:$0xf]
        %v819 = vld [vmem:[#allocation8 + $0x14] sm:$0xf]
        %v820 = vld [vmem:[#allocation8 + $0x18] sm:$0xf]
        %v821 = vld [vmem:[#allocation8 + $0x1c] sm:$0xf]
        %v822 = vld [vmem:[#allocation8 + $0x20] sm:$0xf]
        %v823 = vld [vmem:[#allocation8 + $0x24] sm:$0xf]
        %v824 = vld [vmem:[#allocation8 + $0x28] sm:$0xf]
        %v825 = vld [vmem:[#allocation8 + $0x2c] sm:$0xf]
        %v826 = vld [vmem:[#allocation8 + $0x30] sm:$0xf]
        %v827 = vld [vmem:[#allocation8 + $0x34] sm:$0xf]
        %v828 = vld [vmem:[#allocation8 + $0x38] sm:$0xf]
        %v829 = vld [vmem:[#allocation8 + $0x3c] sm:$0xf]
        %v830 = vld [vmem:[#allocation10] sm:$0x1]
        %v832 = vlaneseq
        %v833 = vshrl.u32 %v832, 7
        %v834 = vsub.s32 0, %v833
        %v835 = vrot.slane %v830, %v834
        %v853 = vunpack.c.l.b16 %v814
        %v854 = vunpack.c.l.b16 %v815
        %v855 = vunpack.c.l.b16 %v816
        %v856 = vunpack.c.l.b16 %v817
        %v857 = vunpack.c.l.b16 %v818
        %v858 = vunpack.c.l.b16 %v819
        %v859 = vunpack.c.l.b16 %v820
        %v860 = vunpack.c.l.b16 %v821
        %v861 = vunpack.c.l.b16 %v822
        %v862 = vunpack.c.l.b16 %v823
        %v863 = vunpack.c.l.b16 %v824
        %v864 = vunpack.c.l.b16 %v825
        %v865 = vunpack.c.l.b16 %v826
        %v866 = vunpack.c.l.b16 %v827
        %v867 = vunpack.c.l.b16 %v828
        %v868 = vunpack.c.l.b16 %v829
        %v869 = vpack.c.b16 %v854, %v853
        %v870 = vpack.c.b16 %v856, %v855
        %v871 = vpack.c.b16 %v858, %v857
        %v872 = vpack.c.b16 %v860, %v859
        %v873 = vpack.c.b16 %v862, %v861
        %v874 = vpack.c.b16 %v864, %v863
        %v875 = vpack.c.b16 %v866, %v865
        %v876 = vpack.c.b16 %v868, %v867
        %885 = vmatprep.subr.bf16.mxu0 0
        %886 = vmatpush1.bf16.msra.mxu0 %v869
        %887 = vmatprep.subr.bf16.mxu0 0
        %888 = vmatpush1.bf16.msra.mxu0 %v870
        %889 = vmatprep.subr.bf16.mxu0 0
        %890 = vmatpush1.bf16.msra.mxu0 %v871
        %891 = vmatprep.subr.bf16.mxu0 0
        %892 = vmatpush1.bf16.msra.mxu0 %v872
        %893 = vmatprep.subr.bf16.mxu0 0
        %894 = vmatpush1.bf16.msra.mxu0 %v873
        %895 = vmatprep.subr.bf16.mxu0 0
        %896 = vmatpush1.bf16.msra.mxu0 %v874
        %897 = vmatprep.subr.bf16.mxu0 0
        %898 = vmatpush1.bf16.msra.mxu0 %v875
        %899 = vmatprep.subr.bf16.mxu0 0
        %900 = vmatpush1.bf16.msra.mxu0 %v876
        %901 = vmatprep.subr.bf16.mxu0 0
        %902 = vmatpush1.bf16.msra.mxu0 0
        %903 = vmatprep.subr.bf16.mxu0 0
        %904 = vmatpush1.bf16.msra.mxu0 0
        %905 = vmatprep.subr.bf16.mxu0 0
        %906 = vmatpush1.bf16.msra.mxu0 0
        %907 = vmatprep.subr.bf16.mxu0 0
        %908 = vmatpush1.bf16.msra.mxu0 0
        %909 = vmatprep.subr.bf16.mxu0 0
        %910 = vmatpush1.bf16.msra.mxu0 0
        %911 = vmatprep.subr.bf16.mxu0 0
        %912 = vmatpush1.bf16.msra.mxu0 0
        %913 = vmatprep.subr.bf16.mxu0 0
        %914 = vmatpush1.bf16.msra.mxu0 0
        %915 = vmatprep.subr.bf16.mxu0 0
        %916 = vmatpush1.bf16.msra.mxu0 0
        %917 = vmatprep.mubr.bf16.mxu0 0
        %918 = vmatmul.mubr.bf16.gmra.mrb[0].mxu0 %v812
        %v919 = vpop.f32.mrb[0].mxu0
        %v920 = vadd.f32 %v835, %v919
        %v921 = vpop.f32.mrb[0].mxu0
        %v922 = vpop.f32.mrb[0].mxu0
        %v923 = vadd.f32 %v835, %v922
        %v924 = vpop.f32.mrb[0].mxu0
        %925 = vdwg.mxu0
        %926 = vst [vmem:[%s296] sm:$0xff] %v920
        %927 = vst [vmem:[%s296 + $0x8] sm:$0xff] %v923
        %s928 = sand.u32 %s142, 1
        %s929 = scalar_lea.sflag [#allocation4], %s928
        %s930 = sand.u32 %s142, 1
        %s931 = smul.addr %s930, 16
        %s932 = scalar_lea.vmem [#allocation11], %s931
        // Predicated region
        $region61: #{tpu_custom_call.1} parent=39 // pred_check
          %p933 = pneg %p152
        $region62: #{tpu_custom_call.1} parent=39 // pred_check_branch
          %935 = sbr.rel (%p933) target = $region64
        $region63: #{tpu_custom_call.1} parent=39 // pred_region
          %s937 = ssub.s32 256, 256
          %938 = vsyncadd %s929, %s937
          %s939 = smul.addr %s24, 2
          %s940 = smul.addr %s939, 128
          %s941 = scalar_lea.hbm %s5, %s940
          %s942 = sshll.u32 %s932, 4
          %s943 = int_to_ptr.vmem [resolvable:$true] %s942
          %948 = dma.vmem_to_hbm [thread:$0]  %s943, 256, %s941, %s929, 128, 128, 8
        $region64: #{tpu_custom_call.1} parent=39 // pred_fallthru
          _
      $region40: #{tpu_custom_call.1} parent=5 // pred_fallthru
        _
      %p949 = scmp.le.s32.totalorder 2, %s19
      // Predicated region
      $region65: #{tpu_custom_call.1} parent=5 // pred_check
        %p950 = pneg %p949
      $region66: #{tpu_custom_call.1} parent=5 // pred_check_branch
        %952 = sbr.rel (%p950) target = $region68
      $region67: #{tpu_custom_call.1} parent=5 // pred_region
        %s953 = ssub.s32 %s19, 2
        // Predicated region
        $region69: #{tpu_custom_call.1} parent=67 // pred_check
          %p954 = pneg %p158
        $region70: #{tpu_custom_call.1} parent=67 // pred_check_branch
          %956 = sbr.rel (%p954) target = $region72
        $region71: #{tpu_custom_call.1} parent=67 // pred_region
          %s957 = sand.u32 %s143, 1
          %s958 = scalar_lea.sflag [#allocation4], %s957
          %s959 = sand.u32 %s143, 1
          %s960 = smul.addr %s959, 16
          %s961 = scalar_lea.vmem [#allocation11], %s960
          %962 = dma.done %s958, 256
        $region72: #{tpu_custom_call.1} parent=67 // pred_fallthru
          _
      $region68: #{tpu_custom_call.1} parent=5 // pred_fallthru
        _
    $region6: #{tpu_custom_call.1} parent=1 // loop_footer
      %s23 = sadd.s32 1, %s19
    $region7: #{tpu_custom_call.1} parent=1 // loop_footer_branch
      %18 = sbr.rel target = $region3
    $region8: #{tpu_custom_call.1} parent=1 // loop_exit
      _
    %963 = vsyncpa [#allocation3], 1
    %s964 = scalar_lea.sflag [#allocation3], 1
    %965 = vsyncpa %s964, 1
    %966 = vsyncpa [#allocation6], 1
    %967 = vsyncpa [#allocation9], 1
    %968 = vsyncpa [#allocation4], 1
    %s969 = scalar_lea.sflag [#allocation4], 1
    %970 = vsyncpa %s969, 1

</llo_original>
